<compile_context>
chip_gen: v7x
topology: tpu7x:2x2x1
jax: 0.10.0
libtpu: 0.0.40
codegen_flags: <defaults>
</compile_context>

<pallas_src>
import functools
import math

import jax
import jax.numpy as jnp
from jax.experimental import pallas as pl
from jax.experimental.pallas import tpu as pltpu

LN_EPS = 1e-5  # torch.nn.LayerNorm default


# ----------------------------------------------------------------------------
# in-kernel helpers
# ----------------------------------------------------------------------------
def _layernorm(x, gamma, beta):
    mean = jnp.mean(x, axis=-1, keepdims=True)
    var = jnp.mean((x - mean) ** 2, axis=-1, keepdims=True)
    return (x - mean) * jax.lax.rsqrt(var + LN_EPS) * gamma + beta


def _gelu_exact(x):
    # torch nn.GELU() default (erf based)
    return 0.5 * x * (1.0 + jax.lax.erf(x * (1.0 / math.sqrt(2.0))))


def _full_spec(a):
    # whole-array block (weights / biases / LN params), same tile every step
    return pl.BlockSpec(a.shape, lambda b, nd=a.ndim: (0,) * nd)


# ----------------------------------------------------------------------------
# Kernel 1: patch embedding  (LN -> Linear -> LN) + positional embedding add
# ----------------------------------------------------------------------------
def patch_embed_kernel(p_ref, pos_ref, g1_ref, b1_ref, w_ref, bl_ref,
                       g2_ref, b2_ref, o_ref):
    x = p_ref[0]                                            # (N, patch_dim) f32
    x = _layernorm(x, g1_ref[0], b1_ref[0])
    # bf16 MXU inputs, f32 accumulation
    x = jnp.dot(x.astype(jnp.bfloat16), w_ref[...],
                preferred_element_type=jnp.float32) + bl_ref[0]
    x = _layernorm(x, g2_ref[0], b2_ref[0])
    o_ref[0] = x + pos_ref[0]                               # (N, dim)


def patch_embed(patches, pos, params):
    B, N, P = patches.shape
    D = params['pe_w'].shape[1]
    w_bf16 = params['pe_w'].astype(jnp.bfloat16)            # halve weight DMA bytes
    args = (patches, pos, params['pe_ln1_g'], params['pe_ln1_b'],
            w_bf16, params['pe_b'], params['pe_ln2_g'], params['pe_ln2_b'])
    in_specs = [pl.BlockSpec((1, N, P), lambda b: (b, 0, 0))] + \
               [_full_spec(a) for a in args[1:]]
    return pl.pallas_call(
        patch_embed_kernel,
        out_shape=jax.ShapeDtypeStruct((B, N, D), jnp.float32),
        grid=(B,),
        in_specs=in_specs,
        out_specs=pl.BlockSpec((1, N, D), lambda b: (b, 0, 0)),
        compiler_params=pltpu.CompilerParams(dimension_semantics=("parallel",)),
    )(*args)


# ----------------------------------------------------------------------------
# Kernel 2: the full Transformer stack fused into one pallas_call
#   grid = (B, depth); x lives in a VMEM scratch across the layer axis.
# ----------------------------------------------------------------------------
def transformer_stack_kernel(x_ref, ga_ref, ba_ref, wqkv_ref, wo_ref, bo_ref,
                             gf_ref, bf_ref, w1_ref, b1_ref, w2_ref, b2_ref,
                             hid_ref, x_sc, attn_sc, *, heads, dim_head):
    inner = heads * dim_head
    scale = dim_head ** -0.5

    # (re)load the activation for this batch element at the first layer
    @pl.when(pl.program_id(1) == 0)
    def _():
        x_sc[...] = x_ref[0]

    x = x_sc[...]                                           # (N, D) f32

    # ---- pre-LN multi-head self attention ----
    xn = _layernorm(x, ga_ref[0, 0], ba_ref[0, 0])
    qkv = jnp.dot(xn.astype(jnp.bfloat16), wqkv_ref[0],
                  preferred_element_type=jnp.float32)       # (N, 3*inner) f32

    # per-head softmax(QK^T)V, head outputs packed into one (N, inner) buffer
    # TODO(synk): for production-size N, tile the sequence and use an
    # online-softmax (flash-style) loop so the (N, N) scores never materialize
    # (v7x has only 64 MiB VMEM); also pad D/inner to 128-lane multiples for
    # lane-dense stores.
    for h in range(heads):
        q = qkv[:, h * dim_head:(h + 1) * dim_head].astype(jnp.bfloat16)
        k = qkv[:, inner + h * dim_head:inner + (h + 1) * dim_head].astype(jnp.bfloat16)
        v = qkv[:, 2 * inner + h * dim_head:2 * inner + (h + 1) * dim_head].astype(jnp.bfloat16)
        dots = jax.lax.dot_general(                          # q @ k^T, f32 acc
            q, k, (((1,), (1,)), ((), ())),
            preferred_element_type=jnp.float32) * scale
        dots = dots - jnp.max(dots, axis=-1, keepdims=True)
        e = jnp.exp(dots)
        p = e * pl.reciprocal(jnp.sum(e, axis=-1, keepdims=True), approx=True)
        oh = jnp.dot(p.astype(jnp.bfloat16), v,
                     preferred_element_type=jnp.float32)     # (N, dh)
        attn_sc[:, h * dim_head:(h + 1) * dim_head] = oh

    # single full-K output projection (concat-over-heads @ Wo)
    attn = jnp.dot(attn_sc[...].astype(jnp.bfloat16), wo_ref[0],
                   preferred_element_type=jnp.float32) + bo_ref[0, 0]
    x = x + attn

    # ---- pre-LN feed forward ----
    xn2 = _layernorm(x, gf_ref[0, 0], bf_ref[0, 0])
    hdd = jnp.dot(xn2.astype(jnp.bfloat16), w1_ref[0],
                  preferred_element_type=jnp.float32) + b1_ref[0, 0]
    hdd = _gelu_exact(hdd)
    x = x + jnp.dot(hdd.astype(jnp.bfloat16), w2_ref[0],
                    preferred_element_type=jnp.float32) + b2_ref[0, 0]

    # carry for next layer + this layer's hidden state
    x_sc[...] = x
    hid_ref[0, 0] = x


def transformer_stack(x, layers, *, heads, dim_head):
    B, N, D = x.shape
    depth = len(layers)
    inner = heads * dim_head
    mlp = layers[0]['w1'].shape[1]

    stack = lambda name: jnp.stack([lp[name] for lp in layers], axis=0)
    ga = stack('ln_a_g'); ba = stack('ln_a_b')                       # (depth, 1, D)
    wqkv = stack('wqkv').astype(jnp.bfloat16)                        # (depth, D, 3*inner)
    wo = stack('wo').astype(jnp.bfloat16)                            # (depth, inner, D)
    bo = stack('bo')                                                 # (depth, 1, D)
    gf = stack('ln_f_g'); bf = stack('ln_f_b')
    w1 = stack('w1').astype(jnp.bfloat16); b1 = stack('b1')          # (depth, D, mlp)
    w2 = stack('w2').astype(jnp.bfloat16); b2 = stack('b2')          # (depth, mlp, D)

    def wspec(a):
        return pl.BlockSpec((1,) + a.shape[1:],
                            lambda b, l, nd=a.ndim: (l,) + (0,) * (nd - 1))

    in_specs = [pl.BlockSpec((1, N, D), lambda b, l: (b, 0, 0))] + \
               [wspec(a) for a in (ga, ba, wqkv, wo, bo, gf, bf, w1, b1, w2, b2)]

    flops = B * depth * (2 * N * D * 3 * inner + heads * 4 * N * N * dim_head
                         + 2 * N * inner * D + 4 * N * D * mlp)
    transcendentals = B * depth * (heads * N * N + N * mlp)
    bytes_accessed = B * depth * (2 * N * D * 4
                                  + 2 * (D * 3 * inner + inner * D + 2 * D * mlp)
                                  + 4 * (8 * D + 2 * mlp))

    kern = functools.partial(transformer_stack_kernel,
                             heads=heads, dim_head=dim_head)
    hidden = pl.pallas_call(
        kern,
        out_shape=jax.ShapeDtypeStruct((depth, B, N, D), jnp.float32),
        grid=(B, depth),
        in_specs=in_specs,
        out_specs=pl.BlockSpec((1, 1, N, D), lambda b, l: (l, b, 0, 0)),
        scratch_shapes=[pltpu.VMEM((N, D), jnp.float32),      # resident x
                        pltpu.VMEM((N, inner), jnp.float32)], # packed head outputs
        compiler_params=pltpu.CompilerParams(
            dimension_semantics=("parallel", "arbitrary")),
        cost_estimate=pl.CostEstimate(flops=int(flops),
                                      transcendentals=int(transcendentals),
                                      bytes_accessed=int(bytes_accessed)),
    )(x, ga, ba, wqkv, wo, bo, gf, bf, w1, b1, w2, b2)
    return hidden                                            # (depth, B, N, D)


# ----------------------------------------------------------------------------
# Kernel 3: final LayerNorm of the Transformer
# ----------------------------------------------------------------------------
def final_ln_kernel(x_ref, g_ref, b_ref, o_ref):
    o_ref[0] = _layernorm(x_ref[0], g_ref[0], b_ref[0])


def final_layernorm(x, g, b):
    B, N, D = x.shape
    return pl.pallas_call(
        final_ln_kernel,
        out_shape=jax.ShapeDtypeStruct((B, N, D), jnp.float32),
        grid=(B,),
        in_specs=[pl.BlockSpec((1, N, D), lambda i: (i, 0, 0)),
                  _full_spec(g), _full_spec(b)],
        out_specs=pl.BlockSpec((1, N, D), lambda i: (i, 0, 0)),
        compiler_params=pltpu.CompilerParams(dimension_semantics=("parallel",)),
    )(x, g, b)


# ----------------------------------------------------------------------------
# glue: einops Rearrange 'b c (f pf) (h p1) (w p2) -> b (f h w) (p1 p2 pf c)'
# ----------------------------------------------------------------------------
def to_patches(video, ph, pw, pf):
    b, c, F, H, W = video.shape
    f, h, w = F // pf, H // ph, W // pw
    x = video.reshape(b, c, f, pf, h, ph, w, pw)
    x = x.transpose(0, 2, 4, 6, 5, 7, 3, 1)                 # b f h w p1 p2 pf c
    return x.reshape(b, f * h * w, ph * pw * pf * c)


# ----------------------------------------------------------------------------
# full ViT3D forward (Pallas)
# ----------------------------------------------------------------------------
def vit3d_forward(video, params, cfg):
    patches = to_patches(video, cfg['ph'], cfg['pw'], cfg['pf'])
    n = patches.shape[1]
    pos = params['pos'][:, :n]                              # pos_embedding[:, :n]
    x = patch_embed(patches, pos, params)
    # emb_dropout=0.0 -> identity
    hidden = transformer_stack(x, params['layers'],
                               heads=cfg['heads'], dim_head=cfg['dim_head'])
    hidden_states_out = [hidden[i] for i in range(hidden.shape[0])]
    out = final_layernorm(hidden[-1], params['final_ln_g'], params['final_ln_b'])
    return out, hidden_states_out
    # TODO(synk): cls_token / pool / mlp_head exist in __init__ but are unused in forward().


# ----------------------------------------------------------------------------
# deterministic parameter init + pure-JAX reference
# ----------------------------------------------------------------------------
def init_params(key, *, patch_dim, dim, depth, heads, dim_head, mlp_dim, num_patches):
    inner = heads * dim_head
    ks = iter(jax.random.split(key, 16 + 16 * depth))
    lin = lambda i, o: jax.random.normal(next(ks), (i, o), jnp.float32) * 0.02
    vec = lambda d, s: jax.random.normal(next(ks), (1, d), jnp.float32) * s
    ln_g = lambda d: 1.0 + vec(d, 0.1)
    params = {
        'pe_ln1_g': ln_g(patch_dim), 'pe_ln1_b': vec(patch_dim, 0.02),
        'pe_w': lin(patch_dim, dim), 'pe_b': vec(dim, 0.02),
        'pe_ln2_g': ln_g(dim), 'pe_ln2_b': vec(dim, 0.02),
        'pos': jax.random.normal(next(ks), (1, num_patches + 1, dim), jnp.float32),
        'final_ln_g': ln_g(dim), 'final_ln_b': vec(dim, 0.02),
        'layers': [],
    }
    for _ in range(depth):
        params['layers'].append({
            'ln_a_g': ln_g(dim), 'ln_a_b': vec(dim, 0.02),
            'wqkv': lin(dim, 3 * inner),
            'wo': lin(inner, dim), 'bo': vec(dim, 0.02),
            'ln_f_g': ln_g(dim), 'ln_f_b': vec(dim, 0.02),
            'w1': lin(dim, mlp_dim), 'b1': vec(mlp_dim, 0.02),
            'w2': lin(mlp_dim, dim), 'b2': vec(dim, 0.02),
        })
    return params


def ref_forward(video, params, cfg):
    def ln(x, g, b):
        m = x.mean(-1, keepdims=True)
        v = ((x - m) ** 2).mean(-1, keepdims=True)
        return (x - m) / jnp.sqrt(v + LN_EPS) * g + b

    heads, dim_head = cfg['heads'], cfg['dim_head']
    inner = heads * dim_head
    scale = dim_head ** -0.5
    x = to_patches(video, cfg['ph'], cfg['pw'], cfg['pf'])
    b, n, _ = x.shape
    x = ln(x, params['pe_ln1_g'], params['pe_ln1_b'])
    x = x @ params['pe_w'] + params['pe_b']
    x = ln(x, params['pe_ln2_g'], params['pe_ln2_b'])
    x = x + params['pos'][:, :n]
    hidden = []
    for lp in params['layers']:
        xn = ln(x, lp['ln_a_g'], lp['ln_a_b'])
        qkv = xn @ lp['wqkv']
        q, k, v = jnp.split(qkv, 3, axis=-1)
        sh = lambda t: t.reshape(b, n, heads, dim_head).transpose(0, 2, 1, 3)
        q, k, v = sh(q), sh(k), sh(v)
        dots = jnp.einsum('bhid,bhjd->bhij', q, k) * scale
        attn = jax.nn.softmax(dots, axis=-1)
        o = jnp.einsum('bhij,bhjd->bhid', attn, v).transpose(0, 2, 1, 3).reshape(b, n, inner)
        x = x + (o @ lp['wo'] + lp['bo'])
        xn2 = ln(x, lp['ln_f_g'], lp['ln_f_b'])
        hdd = xn2 @ lp['w1'] + lp['b1']
        hdd = 0.5 * hdd * (1.0 + jax.lax.erf(hdd / math.sqrt(2.0)))
        x = x + (hdd @ lp['w2'] + lp['b2'])
        hidden.append(x)
    return ln(x, params['final_ln_g'], params['final_ln_b']), hidden


# ----------------------------------------------------------------------------
if __name__ == "__main__":
    # small config consistent with the module
    B, C = 2, 3
    image_size, image_patch_size = 16, 8
    frames, frame_patch_size = 4, 2
    dim, depth, heads, dim_head, mlp_dim = 32, 2, 2, 16, 64

    num_patches = (image_size // image_patch_size) ** 2 * (frames // frame_patch_size)   # 8
    patch_dim = C * image_patch_size * image_patch_size * frame_patch_size               # 384

    cfg = dict(ph=image_patch_size, pw=image_patch_size, pf=frame_patch_size,
               heads=heads, dim_head=dim_head)

    key = jax.random.PRNGKey(0)
    k_video, k_params = jax.random.split(key)
    video = jax.random.normal(k_video, (B, C, frames, image_size, image_size), jnp.float32)
    params = init_params(k_params, patch_dim=patch_dim, dim=dim, depth=depth,
                         heads=heads, dim_head=dim_head, mlp_dim=mlp_dim,
                         num_patches=num_patches)

    out, hidden_states_out = vit3d_forward(video, params, cfg)
    out = jax.block_until_ready(out)
    hidden_states_out = [jax.block_until_ready(h) for h in hidden_states_out]

    # sanity check against a pure-JAX f32 reference (kernel uses bf16 MXU
    # inputs with f32 accumulation, hence the looser tolerance)
    ref_out, ref_hidden = ref_forward(video, params, cfg)
    assert out.shape == (B, num_patches, dim)
    assert len(hidden_states_out) == depth
    assert jnp.allclose(out, ref_out, atol=2e-2, rtol=2e-2)
    for a, r in zip(hidden_states_out, ref_hidden):
        assert jnp.allclose(a, r, atol=2e-2, rtol=2e-2)

    print("KERNEL_OK")
</pallas_src>

<mosaic_0001>
module attributes {stable_mosaic.version = 11 : i64} {
  func.func @patch_embed_kernel(%arg0: i32, %arg1: memref<1x8x384xf32, #tpu.memory_space<vmem>>, %arg2: memref<1x8x32xf32, #tpu.memory_space<vmem>>, %arg3: memref<1x384xf32, #tpu.memory_space<vmem>>, %arg4: memref<1x384xf32, #tpu.memory_space<vmem>>, %arg5: memref<384x32xbf16, #tpu.memory_space<vmem>>, %arg6: memref<1x32xf32, #tpu.memory_space<vmem>>, %arg7: memref<1x32xf32, #tpu.memory_space<vmem>>, %arg8: memref<1x32xf32, #tpu.memory_space<vmem>>, %arg9: memref<1x8x32xf32, #tpu.memory_space<vmem>>) attributes {dimension_semantics = [#tpu.dimension_semantics<parallel>], iteration_bounds = array<i64: 2>, scalar_prefetch = 0 : i64, scratch_operands = 0 : i64, tpu.core_type = #tpu.core_type<tc>, window_params = [{transform_indices = @transform_0, window_bounds = array<i64: 1, 8, 384>}, {pipeline_mode = #tpu.pipeline_mode<synchronous>, transform_indices = @transform_1, window_bounds = array<i64: 1, 8, 32>}, {pipeline_mode = #tpu.pipeline_mode<synchronous>, transform_indices = @transform_2, window_bounds = array<i64: 1, 384>}, {pipeline_mode = #tpu.pipeline_mode<synchronous>, transform_indices = @transform_3, window_bounds = array<i64: 1, 384>}, {pipeline_mode = #tpu.pipeline_mode<synchronous>, transform_indices = @transform_4, window_bounds = array<i64: 384, 32>}, {pipeline_mode = #tpu.pipeline_mode<synchronous>, transform_indices = @transform_5, window_bounds = array<i64: 1, 32>}, {pipeline_mode = #tpu.pipeline_mode<synchronous>, transform_indices = @transform_6, window_bounds = array<i64: 1, 32>}, {pipeline_mode = #tpu.pipeline_mode<synchronous>, transform_indices = @transform_7, window_bounds = array<i64: 1, 32>}, {transform_indices = @transform_8, window_bounds = array<i64: 1, 8, 32>}]} {
    %c0 = arith.constant 0 : index
    %c0_0 = arith.constant 0 : index
    %c0_1 = arith.constant 0 : index
    %0 = vector.load %arg1[%c0, %c0_0, %c0_1] : memref<1x8x384xf32, #tpu.memory_space<vmem>>, vector<1x8x384xf32>
    %1 = vector.shape_cast %0 : vector<1x8x384xf32> to vector<8x384xf32>
    %c0_2 = arith.constant 0 : index
    %c0_3 = arith.constant 0 : index
    %2 = vector.load %arg3[%c0_2, %c0_3] : memref<1x384xf32, #tpu.memory_space<vmem>>, vector<1x384xf32>
    %3 = vector.shape_cast %2 : vector<1x384xf32> to vector<384xf32>
    %c0_4 = arith.constant 0 : index
    %c0_5 = arith.constant 0 : index
    %4 = vector.load %arg4[%c0_4, %c0_5] : memref<1x384xf32, #tpu.memory_space<vmem>>, vector<1x384xf32>
    %5 = vector.shape_cast %4 : vector<1x384xf32> to vector<384xf32>
    %cst = arith.constant dense<0.000000e+00> : vector<8xf32>
    %6 = vector.multi_reduction <add>, %1, %cst [1] : vector<8x384xf32> to vector<8xf32>
    %7 = vector.shape_cast %6 : vector<8xf32> to vector<8x1xf32>
    %cst_6 = arith.constant 3.840000e+02 : f32
    %8 = vector.broadcast %cst_6 : f32 to vector<8x1xf32>
    %9 = arith.divf %7, %8 : vector<8x1xf32>
    %10 = vector.broadcast %9 : vector<8x1xf32> to vector<8x384xf32>
    %11 = arith.subf %1, %10 : vector<8x384xf32>
    %12 = arith.mulf %11, %11 : vector<8x384xf32>
    %cst_7 = arith.constant dense<0.000000e+00> : vector<8xf32>
    %13 = vector.multi_reduction <add>, %12, %cst_7 [1] : vector<8x384xf32> to vector<8xf32>
    %14 = vector.shape_cast %13 : vector<8xf32> to vector<8x1xf32>
    %cst_8 = arith.constant 3.840000e+02 : f32
    %15 = vector.broadcast %cst_8 : f32 to vector<8x1xf32>
    %16 = arith.divf %14, %15 : vector<8x1xf32>
    %17 = vector.broadcast %9 : vector<8x1xf32> to vector<8x384xf32>
    %18 = arith.subf %1, %17 : vector<8x384xf32>
    %cst_9 = arith.constant 9.99999974E-6 : f32
    %19 = vector.broadcast %cst_9 : f32 to vector<8x1xf32>
    %20 = arith.addf %16, %19 : vector<8x1xf32>
    %21 = math.rsqrt %20 : vector<8x1xf32>
    %22 = vector.broadcast %21 : vector<8x1xf32> to vector<8x384xf32>
    %23 = arith.mulf %18, %22 : vector<8x384xf32>
    %24 = vector.shape_cast %3 : vector<384xf32> to vector<1x384xf32>
    %25 = vector.broadcast %24 : vector<1x384xf32> to vector<8x384xf32>
    %26 = arith.mulf %23, %25 : vector<8x384xf32>
    %27 = vector.shape_cast %5 : vector<384xf32> to vector<1x384xf32>
    %28 = vector.broadcast %27 : vector<1x384xf32> to vector<8x384xf32>
    %29 = arith.addf %26, %28 : vector<8x384xf32>
    %30 = arith.truncf %29 : vector<8x384xf32> to vector<8x384xbf16>
    %c0_10 = arith.constant 0 : index
    %c0_11 = arith.constant 0 : index
    %31 = vector.load %arg5[%c0_10, %c0_11] : memref<384x32xbf16, #tpu.memory_space<vmem>>, vector<384x32xbf16>
    %cst_12 = arith.constant dense<0.000000e+00> : vector<8x32xf32>
    %32 = tpu.matmul %30, %31, %cst_12 {dimension_numbers = #tpu.dot_dimension_numbers<[1], [0], [0], [1], [0, 0, 1, 1], [], []>} : vector<8x384xbf16>, vector<384x32xbf16>, vector<8x32xf32> -> vector<8x32xf32>
    %c0_13 = arith.constant 0 : index
    %c0_14 = arith.constant 0 : index
    %33 = vector.load %arg6[%c0_13, %c0_14] : memref<1x32xf32, #tpu.memory_space<vmem>>, vector<1x32xf32>
    %34 = vector.shape_cast %33 : vector<1x32xf32> to vector<32xf32>
    %35 = vector.shape_cast %34 : vector<32xf32> to vector<1x32xf32>
    %36 = vector.broadcast %35 : vector<1x32xf32> to vector<8x32xf32>
    %37 = arith.addf %32, %36 : vector<8x32xf32>
    %c0_15 = arith.constant 0 : index
    %c0_16 = arith.constant 0 : index
    %38 = vector.load %arg7[%c0_15, %c0_16] : memref<1x32xf32, #tpu.memory_space<vmem>>, vector<1x32xf32>
    %39 = vector.shape_cast %38 : vector<1x32xf32> to vector<32xf32>
    %c0_17 = arith.constant 0 : index
    %c0_18 = arith.constant 0 : index
    %40 = vector.load %arg8[%c0_17, %c0_18] : memref<1x32xf32, #tpu.memory_space<vmem>>, vector<1x32xf32>
    %41 = vector.shape_cast %40 : vector<1x32xf32> to vector<32xf32>
    %cst_19 = arith.constant dense<0.000000e+00> : vector<8xf32>
    %42 = vector.multi_reduction <add>, %37, %cst_19 [1] : vector<8x32xf32> to vector<8xf32>
    %43 = vector.shape_cast %42 : vector<8xf32> to vector<8x1xf32>
    %cst_20 = arith.constant 3.200000e+01 : f32
    %44 = vector.broadcast %cst_20 : f32 to vector<8x1xf32>
    %45 = arith.divf %43, %44 : vector<8x1xf32>
    %46 = vector.broadcast %45 : vector<8x1xf32> to vector<8x32xf32>
    %47 = arith.subf %37, %46 : vector<8x32xf32>
    %48 = arith.mulf %47, %47 : vector<8x32xf32>
    %cst_21 = arith.constant dense<0.000000e+00> : vector<8xf32>
    %49 = vector.multi_reduction <add>, %48, %cst_21 [1] : vector<8x32xf32> to vector<8xf32>
    %50 = vector.shape_cast %49 : vector<8xf32> to vector<8x1xf32>
    %cst_22 = arith.constant 3.200000e+01 : f32
    %51 = vector.broadcast %cst_22 : f32 to vector<8x1xf32>
    %52 = arith.divf %50, %51 : vector<8x1xf32>
    %53 = vector.broadcast %45 : vector<8x1xf32> to vector<8x32xf32>
    %54 = arith.subf %37, %53 : vector<8x32xf32>
    %cst_23 = arith.constant 9.99999974E-6 : f32
    %55 = vector.broadcast %cst_23 : f32 to vector<8x1xf32>
    %56 = arith.addf %52, %55 : vector<8x1xf32>
    %57 = math.rsqrt %56 : vector<8x1xf32>
    %58 = vector.broadcast %57 : vector<8x1xf32> to vector<8x32xf32>
    %59 = arith.mulf %54, %58 : vector<8x32xf32>
    %60 = vector.shape_cast %39 : vector<32xf32> to vector<1x32xf32>
    %61 = vector.broadcast %60 : vector<1x32xf32> to vector<8x32xf32>
    %62 = arith.mulf %59, %61 : vector<8x32xf32>
    %63 = vector.shape_cast %41 : vector<32xf32> to vector<1x32xf32>
    %64 = vector.broadcast %63 : vector<1x32xf32> to vector<8x32xf32>
    %65 = arith.addf %62, %64 : vector<8x32xf32>
    %c0_24 = arith.constant 0 : index
    %c0_25 = arith.constant 0 : index
    %c0_26 = arith.constant 0 : index
    %66 = vector.load %arg2[%c0_24, %c0_25, %c0_26] : memref<1x8x32xf32, #tpu.memory_space<vmem>>, vector<1x8x32xf32>
    %67 = vector.shape_cast %66 : vector<1x8x32xf32> to vector<8x32xf32>
    %68 = arith.addf %65, %67 : vector<8x32xf32>
    %c0_27 = arith.constant 0 : index
    %c0_28 = arith.constant 0 : index
    %c0_29 = arith.constant 0 : index
    %69 = vector.load %arg9[%c0_27, %c0_28, %c0_29] : memref<1x8x32xf32, #tpu.memory_space<vmem>>, vector<1x8x32xf32>
    %70 = vector.shape_cast %69 : vector<1x8x32xf32> to vector<8x32xf32>
    %71 = vector.shape_cast %68 : vector<8x32xf32> to vector<1x8x32xf32>
    tpu.vector_store %arg9[%c0_27, %c0_28, %c0_29], %71 {strides = array<i32>} : memref<1x8x32xf32, #tpu.memory_space<vmem>>, vector<1x8x32xf32>,
    return
  }
  func.func @transform_0(%arg0: i32) -> (i32, i32, i32) {
    %c0_i32 = arith.constant 0 : i32
    %c0_i32_0 = arith.constant 0 : i32
    %c0_i32_1 = arith.constant 0 : i32
    return %arg0, %c0_i32, %c0_i32_0 : i32, i32, i32
  }
  func.func @transform_1(%arg0: i32) -> (i32, i32, i32) {
    %c0_i32 = arith.constant 0 : i32
    %c0_i32_0 = arith.constant 0 : i32
    %c0_i32_1 = arith.constant 0 : i32
    %c0_i32_2 = arith.constant 0 : i32
    return %c0_i32, %c0_i32_0, %c0_i32_1 : i32, i32, i32
  }
  func.func @transform_2(%arg0: i32) -> (i32, i32) {
    %c0_i32 = arith.constant 0 : i32
    %c0_i32_0 = arith.constant 0 : i32
    %c0_i32_1 = arith.constant 0 : i32
    return %c0_i32, %c0_i32_0 : i32, i32
  }
  func.func @transform_3(%arg0: i32) -> (i32, i32) {
    %c0_i32 = arith.constant 0 : i32
    %c0_i32_0 = arith.constant 0 : i32
    %c0_i32_1 = arith.constant 0 : i32
    return %c0_i32, %c0_i32_0 : i32, i32
  }
  func.func @transform_4(%arg0: i32) -> (i32, i32) {
    %c0_i32 = arith.constant 0 : i32
    %c0_i32_0 = arith.constant 0 : i32
    %c0_i32_1 = arith.constant 0 : i32
    return %c0_i32, %c0_i32_0 : i32, i32
  }
  func.func @transform_5(%arg0: i32) -> (i32, i32) {
    %c0_i32 = arith.constant 0 : i32
    %c0_i32_0 = arith.constant 0 : i32
    %c0_i32_1 = arith.constant 0 : i32
    return %c0_i32, %c0_i32_0 : i32, i32
  }
  func.func @transform_6(%arg0: i32) -> (i32, i32) {
    %c0_i32 = arith.constant 0 : i32
    %c0_i32_0 = arith.constant 0 : i32
    %c0_i32_1 = arith.constant 0 : i32
    return %c0_i32, %c0_i32_0 : i32, i32
  }
  func.func @transform_7(%arg0: i32) -> (i32, i32) {
    %c0_i32 = arith.constant 0 : i32
    %c0_i32_0 = arith.constant 0 : i32
    %c0_i32_1 = arith.constant 0 : i32
    return %c0_i32, %c0_i32_0 : i32, i32
  }
  func.func @transform_8(%arg0: i32) -> (i32, i32, i32) {
    %c0_i32 = arith.constant 0 : i32
    %c0_i32_0 = arith.constant 0 : i32
    %c0_i32_1 = arith.constant 0 : i32
    return %arg0, %c0_i32, %c0_i32_0 : i32, i32, i32
  }
}

</mosaic_0001>

<llo_original>
// kernel: tpu_custom_call.1
$region0: #{tpu_custom_call.1}
  #allocation0 [shape = 'u32[]', space=smem, size = 0x4, offset = 0x4, fixed_abs, tag = 'smem constant byte address 0x4 - core index']
  #allocation1 [shape = 'u32[144,128]{1,0:T(1,128)}', space=vmem, size = 0x12000, scoped, tag = 'internal scratch']
  %s0 = inlined_call_operand.vmem [shape: f32[2,8,384], index: 0, kind: input, shape index: {}]
  %s1 = inlined_call_operand.vmem [shape: f32[1,8,32], index: 1, kind: input, shape index: {}]
  %s2 = inlined_call_operand.vmem [shape: f32[1,384], index: 2, kind: input, shape index: {}]
  %s3 = inlined_call_operand.vmem [shape: f32[1,384], index: 3, kind: input, shape index: {}]
  %s4 = inlined_call_operand.vmem [shape: bf16[384,32], index: 4, kind: input, shape index: {}]
  %s5 = inlined_call_operand.vmem [shape: f32[1,32], index: 5, kind: input, shape index: {}]
  %s6 = inlined_call_operand.vmem [shape: f32[1,32], index: 6, kind: input, shape index: {}]
  %s7 = inlined_call_operand.vmem [shape: f32[1,32], index: 7, kind: input, shape index: {}]
  %s8 = inlined_call_operand.hbm [shape: f32[2,8,32], index: 8, kind: output, shape index: {}]
  %s9 = sld [smem:[#allocation0]]
  $region65: #{tpu_custom_call.1} parent=0
    _
  %s11 = ssub.s32 1, %s9
  %s12 = scalar_select 0, %s11, %s9
  $region1: #{tpu_custom_call.1} parent=0
    #allocation2 [shape = 'u8[8192]{0}', space=vmem, size = 0x2000, scoped, tag = 'output window, operand 0']
    #allocation3 [shape = 's32[2]{0}', space=sflag, size = 0x8, scoped, tag = 'scoped memory for tpu_custom_call.1']
    %13 = vsyncpa [#allocation3], 0
    %s14 = scalar_lea.sflag [#allocation3], 1
    %15 = vsyncpa %s14, 0
    loop: start=0, step=1, limit=4
    $region2: #{tpu_custom_call.1} parent=1 // loop_pre_header
      _
    $region3: #{tpu_custom_call.1} parent=1 // loop_header
      %s17 = sphi 0, %s21
      %p18 = scmp.ge.s32.totalorder %s17, 4
      %s27 = sphi 0, %s29
      %s30 = sphi 0, %s27
      %s31 = sphi 0, %s30
      %s47 = sphi 0, %s31
      %s51 = sphi 0, %s51
      %s53 = sphi 0, %s51
      %s54 = sphi 0, %s53
      %s68 = sphi 0, %s54
      %s72 = sphi 0, %s72
      %s74 = sphi 0, %s72
      %s75 = sphi 0, %s74
      %s89 = sphi 0, %s75
      %s93 = sphi 0, %s93
      %s95 = sphi 0, %s93
      %s96 = sphi 0, %s95
      %s110 = sphi 0, %s96
      %s114 = sphi 0, %s114
      %s116 = sphi 0, %s114
      %s117 = sphi 0, %s116
      %s131 = sphi 0, %s117
      %s135 = sphi 0, %s135
      %s137 = sphi 0, %s135
      %s138 = sphi 0, %s137
      %s152 = sphi 0, %s138
      %s156 = sphi 0, %s156
      %s158 = sphi 0, %s156
      %s159 = sphi 0, %s158
      %s173 = sphi 0, %s159
      %s177 = sphi 0, %s177
      %s179 = sphi 0, %s177
      %s180 = sphi 0, %s179
      %s194 = sphi 0, %s180
      %s200 = sphi 0, %s202
      %s203 = sphi 0, %s200
      %s204 = sphi 0, %s203
      %s220 = sphi 0, %s204
    $region4: #{tpu_custom_call.1} parent=1 // loop_header_branch
      %20 = sbr.rel (%p18) target = $region8
    $region5: #{tpu_custom_call.1} parent=1 // loop_body
      %s22 = ssub.s32 %s17, 1
      %s23 = ssub.s32 %s17, 2
      %s24 = sadd.s32 %s17, 1
      %s25 = ssub.s32 %s17, %s24
      %p26 = scmp.eq.s32.totalorder %s25, 0
      %s28 = sadd.s32 %s27, 1
      %s29 = scalar_select %p26, %s27, %s28
      %p32 = pneg %p26
      %p33 = scmp.eq.s32.totalorder %s17, 1
      %p34 = por %p32, %p33
      %p35 = scmp.ne.s32.totalorder %s27, %s30
      %p36 = scmp.eq.s32.totalorder %s17, 0
      %p37 = por %p35, %p36
      %p38 = scmp.ne.s32.totalorder %s27, %s30
      %p39 = scmp.eq.s32.totalorder %s22, 1
      %p40 = por %p38, %p39
      %p41 = scmp.ne.s32.totalorder %s30, %s31
      %p42 = scmp.eq.s32.totalorder %s22, 0
      %p43 = por %p41, %p42
      %p44 = scmp.ne.s32.totalorder %s30, %s31
      %p45 = scmp.eq.s32.totalorder %s23, 1
      %p46 = por %p44, %p45
      %p48 = scmp.ne.s32.totalorder %s31, %s47
      %p49 = scmp.eq.s32.totalorder %s23, 0
      %p50 = por %p48, %p49
      %s52 = sadd.s32 %s51, 1
      %p55 = scmp.eq.s32.totalorder %s17, 1
      %p56 = scmp.ne.s32.totalorder %s51, %s53
      %p57 = scmp.eq.s32.totalorder %s17, 0
      %p58 = por %p56, %p57
      %p59 = scmp.ne.s32.totalorder %s51, %s53
      %p60 = scmp.eq.s32.totalorder %s22, 1
      %p61 = por %p59, %p60
      %p62 = scmp.ne.s32.totalorder %s53, %s54
      %p63 = scmp.eq.s32.totalorder %s22, 0
      %p64 = por %p62, %p63
      %p65 = scmp.ne.s32.totalorder %s53, %s54
      %p66 = scmp.eq.s32.totalorder %s23, 1
      %p67 = por %p65, %p66
      %p69 = scmp.ne.s32.totalorder %s54, %s68
      %p70 = scmp.eq.s32.totalorder %s23, 0
      %p71 = por %p69, %p70
      %s73 = sadd.s32 %s72, 1
      %p76 = scmp.eq.s32.totalorder %s17, 1
      %p77 = scmp.ne.s32.totalorder %s72, %s74
      %p78 = scmp.eq.s32.totalorder %s17, 0
      %p79 = por %p77, %p78
      %p80 = scmp.ne.s32.totalorder %s72, %s74
      %p81 = scmp.eq.s32.totalorder %s22, 1
      %p82 = por %p80, %p81
      %p83 = scmp.ne.s32.totalorder %s74, %s75
      %p84 = scmp.eq.s32.totalorder %s22, 0
      %p85 = por %p83, %p84
      %p86 = scmp.ne.s32.totalorder %s74, %s75
      %p87 = scmp.eq.s32.totalorder %s23, 1
      %p88 = por %p86, %p87
      %p90 = scmp.ne.s32.totalorder %s75, %s89
      %p91 = scmp.eq.s32.totalorder %s23, 0
      %p92 = por %p90, %p91
      %s94 = sadd.s32 %s93, 1
      %p97 = scmp.eq.s32.totalorder %s17, 1
      %p98 = scmp.ne.s32.totalorder %s93, %s95
      %p99 = scmp.eq.s32.totalorder %s17, 0
      %p100 = por %p98, %p99
      %p101 = scmp.ne.s32.totalorder %s93, %s95
      %p102 = scmp.eq.s32.totalorder %s22, 1
      %p103 = por %p101, %p102
      %p104 = scmp.ne.s32.totalorder %s95, %s96
      %p105 = scmp.eq.s32.totalorder %s22, 0
      %p106 = por %p104, %p105
      %p107 = scmp.ne.s32.totalorder %s95, %s96
      %p108 = scmp.eq.s32.totalorder %s23, 1
      %p109 = por %p107, %p108
      %p111 = scmp.ne.s32.totalorder %s96, %s110
      %p112 = scmp.eq.s32.totalorder %s23, 0
      %p113 = por %p111, %p112
      %s115 = sadd.s32 %s114, 1
      %p118 = scmp.eq.s32.totalorder %s17, 1
      %p119 = scmp.ne.s32.totalorder %s114, %s116
      %p120 = scmp.eq.s32.totalorder %s17, 0
      %p121 = por %p119, %p120
      %p122 = scmp.ne.s32.totalorder %s114, %s116
      %p123 = scmp.eq.s32.totalorder %s22, 1
      %p124 = por %p122, %p123
      %p125 = scmp.ne.s32.totalorder %s116, %s117
      %p126 = scmp.eq.s32.totalorder %s22, 0
      %p127 = por %p125, %p126
      %p128 = scmp.ne.s32.totalorder %s116, %s117
      %p129 = scmp.eq.s32.totalorder %s23, 1
      %p130 = por %p128, %p129
      %p132 = scmp.ne.s32.totalorder %s117, %s131
      %p133 = scmp.eq.s32.totalorder %s23, 0
      %p134 = por %p132, %p133
      %s136 = sadd.s32 %s135, 1
      %p139 = scmp.eq.s32.totalorder %s17, 1
      %p140 = scmp.ne.s32.totalorder %s135, %s137
      %p141 = scmp.eq.s32.totalorder %s17, 0
      %p142 = por %p140, %p141
      %p143 = scmp.ne.s32.totalorder %s135, %s137
      %p144 = scmp.eq.s32.totalorder %s22, 1
      %p145 = por %p143, %p144
      %p146 = scmp.ne.s32.totalorder %s137, %s138
      %p147 = scmp.eq.s32.totalorder %s22, 0
      %p148 = por %p146, %p147
      %p149 = scmp.ne.s32.totalorder %s137, %s138
      %p150 = scmp.eq.s32.totalorder %s23, 1
      %p151 = por %p149, %p150
      %p153 = scmp.ne.s32.totalorder %s138, %s152
      %p154 = scmp.eq.s32.totalorder %s23, 0
      %p155 = por %p153, %p154
      %s157 = sadd.s32 %s156, 1
      %p160 = scmp.eq.s32.totalorder %s17, 1
      %p161 = scmp.ne.s32.totalorder %s156, %s158
      %p162 = scmp.eq.s32.totalorder %s17, 0
      %p163 = por %p161, %p162
      %p164 = scmp.ne.s32.totalorder %s156, %s158
      %p165 = scmp.eq.s32.totalorder %s22, 1
      %p166 = por %p164, %p165
      %p167 = scmp.ne.s32.totalorder %s158, %s159
      %p168 = scmp.eq.s32.totalorder %s22, 0
      %p169 = por %p167, %p168
      %p170 = scmp.ne.s32.totalorder %s158, %s159
      %p171 = scmp.eq.s32.totalorder %s23, 1
      %p172 = por %p170, %p171
      %p174 = scmp.ne.s32.totalorder %s159, %s173
      %p175 = scmp.eq.s32.totalorder %s23, 0
      %p176 = por %p174, %p175
      %s178 = sadd.s32 %s177, 1
      %p181 = scmp.eq.s32.totalorder %s17, 1
      %p182 = scmp.ne.s32.totalorder %s177, %s179
      %p183 = scmp.eq.s32.totalorder %s17, 0
      %p184 = por %p182, %p183
      %p185 = scmp.ne.s32.totalorder %s177, %s179
      %p186 = scmp.eq.s32.totalorder %s22, 1
      %p187 = por %p185, %p186
      %p188 = scmp.ne.s32.totalorder %s179, %s180
      %p189 = scmp.eq.s32.totalorder %s22, 0
      %p190 = por %p188, %p189
      %p191 = scmp.ne.s32.totalorder %s179, %s180
      %p192 = scmp.eq.s32.totalorder %s23, 1
      %p193 = por %p191, %p192
      %p195 = scmp.ne.s32.totalorder %s180, %s194
      %p196 = scmp.eq.s32.totalorder %s23, 0
      %p197 = por %p195, %p196
      %s198 = ssub.s32 %s17, %s24
      %p199 = scmp.eq.s32.totalorder %s198, 0
      %s201 = sadd.s32 %s200, 1
      %s202 = scalar_select %p199, %s200, %s201
      %p205 = pneg %p199
      %p206 = scmp.eq.s32.totalorder %s17, 1
      %p207 = por %p205, %p206
      %p208 = scmp.ne.s32.totalorder %s200, %s203
      %p209 = scmp.eq.s32.totalorder %s17, 0
      %p210 = por %p208, %p209
      %p211 = scmp.ne.s32.totalorder %s200, %s203
      %p212 = scmp.eq.s32.totalorder %s22, 1
      %p213 = por %p211, %p212
      %p214 = scmp.ne.s32.totalorder %s203, %s204
      %p215 = scmp.eq.s32.totalorder %s22, 0
      %p216 = por %p214, %p215
      %p217 = scmp.ne.s32.totalorder %s203, %s204
      %p218 = scmp.eq.s32.totalorder %s23, 1
      %p219 = por %p217, %p218
      %p221 = scmp.ne.s32.totalorder %s204, %s220
      %p222 = scmp.eq.s32.totalorder %s23, 0
      %p223 = por %p221, %p222
      %p224 = scmp.le.s32.totalorder 1, %s17
      %p225 = scmp.lt.s32.totalorder %s17, 3
      %p226 = pnand %p224, %p225
      %p227 = pneg %p226
      // Predicated region
      $region9: #{tpu_custom_call.1} parent=5 // pred_check
        _
      $region10: #{tpu_custom_call.1} parent=5 // pred_check_branch
        %229 = sbr.rel (%p226) target = $region12
      $region11: #{tpu_custom_call.1} parent=5 // pred_region
        %s230 = ssub.s32 %s17, 1
        // Predicated region
        $region13: #{tpu_custom_call.1} parent=11 // pred_check
          %p231 = pneg %p64
        $region14: #{tpu_custom_call.1} parent=11 // pred_check_branch
          %233 = sbr.rel (%p231) target = $region16
        $region15: #{tpu_custom_call.1} parent=11 // pred_region
          _
        $region16: #{tpu_custom_call.1} parent=11 // pred_fallthru
          _
        // Predicated region
        $region17: #{tpu_custom_call.1} parent=11 // pred_check
          %p234 = pneg %p85
        $region18: #{tpu_custom_call.1} parent=11 // pred_check_branch
          %236 = sbr.rel (%p234) target = $region20
        $region19: #{tpu_custom_call.1} parent=11 // pred_region
          _
        $region20: #{tpu_custom_call.1} parent=11 // pred_fallthru
          _
        // Predicated region
        $region21: #{tpu_custom_call.1} parent=11 // pred_check
          %p237 = pneg %p106
        $region22: #{tpu_custom_call.1} parent=11 // pred_check_branch
          %239 = sbr.rel (%p237) target = $region24
        $region23: #{tpu_custom_call.1} parent=11 // pred_region
          _
        $region24: #{tpu_custom_call.1} parent=11 // pred_fallthru
          _
        // Predicated region
        $region25: #{tpu_custom_call.1} parent=11 // pred_check
          %p240 = pneg %p127
        $region26: #{tpu_custom_call.1} parent=11 // pred_check_branch
          %242 = sbr.rel (%p240) target = $region28
        $region27: #{tpu_custom_call.1} parent=11 // pred_region
          _
        $region28: #{tpu_custom_call.1} parent=11 // pred_fallthru
          _
        // Predicated region
        $region29: #{tpu_custom_call.1} parent=11 // pred_check
          %p243 = pneg %p148
        $region30: #{tpu_custom_call.1} parent=11 // pred_check_branch
          %245 = sbr.rel (%p243) target = $region32
        $region31: #{tpu_custom_call.1} parent=11 // pred_region
          _
        $region32: #{tpu_custom_call.1} parent=11 // pred_fallthru
          _
        // Predicated region
        $region33: #{tpu_custom_call.1} parent=11 // pred_check
          %p246 = pneg %p169
        $region34: #{tpu_custom_call.1} parent=11 // pred_check_branch
          %248 = sbr.rel (%p246) target = $region36
        $region35: #{tpu_custom_call.1} parent=11 // pred_region
          _
        $region36: #{tpu_custom_call.1} parent=11 // pred_fallthru
          _
        // Predicated region
        $region37: #{tpu_custom_call.1} parent=11 // pred_check
          %p249 = pneg %p190
        $region38: #{tpu_custom_call.1} parent=11 // pred_check_branch
          %251 = sbr.rel (%p249) target = $region40
        $region39: #{tpu_custom_call.1} parent=11 // pred_region
          _
        $region40: #{tpu_custom_call.1} parent=11 // pred_fallthru
          _
      $region12: #{tpu_custom_call.1} parent=5 // pred_fallthru
        _
      %p252 = scmp.lt.s32.totalorder %s17, 2
      // Predicated region
      $region41: #{tpu_custom_call.1} parent=5 // pred_check
        %p253 = pneg %p252
      $region42: #{tpu_custom_call.1} parent=5 // pred_check_branch
        %255 = sbr.rel (%p253) target = $region44
      $region43: #{tpu_custom_call.1} parent=5 // pred_region
        // Predicated region
        $region45: #{tpu_custom_call.1} parent=43 // pred_check
          %p256 = pneg %p37
        $region46: #{tpu_custom_call.1} parent=43 // pred_check_branch
          %258 = sbr.rel (%p256) target = $region48
        $region47: #{tpu_custom_call.1} parent=43 // pred_region
          %p259 = scmp.lt.s32.totalorder %s17, 1
          %s260 = scalar_select %p259, %s17, 1
          %s261 = smul.addr %s260, 3
          %s262 = smul.addr %s261, 8
          %s263 = scalar_lea.vmem %s0, %s262
        $region48: #{tpu_custom_call.1} parent=43 // pred_fallthru
          _
      $region44: #{tpu_custom_call.1} parent=5 // pred_fallthru
        _
      %p264 = scmp.le.s32.totalorder 1, %s17
      %p265 = scmp.lt.s32.totalorder %s17, 3
      %p266 = pnand %p264, %p265
      %p267 = pneg %p266
      // Predicated region
      $region49: #{tpu_custom_call.1} parent=5 // pred_check
        _
      $region50: #{tpu_custom_call.1} parent=5 // pred_check_branch
        %269 = sbr.rel (%p266) target = $region52
      $region51: #{tpu_custom_call.1} parent=5 // pred_region
        %s270 = ssub.s32 %s17, 1
        %p271 = scmp.lt.s32.totalorder %s22, 1
        %s272 = scalar_select %p271, %s22, 1
        %s273 = smul.addr %s272, 3
        %s274 = smul.addr %s273, 8
        %s275 = scalar_lea.vmem %s0, %s274
        %p276 = pneg %p43
        %p277 = pneg %p40
        %p278 = pneg %p64
        %p279 = pneg %p61
        %p280 = pneg %p85
        %p281 = pneg %p82
        %p282 = pneg %p106
        %p283 = pneg %p103
        %p284 = pneg %p127
        %p285 = pneg %p124
        %p286 = pneg %p148
        %p287 = pneg %p145
        %p288 = pneg %p169
        %p289 = pneg %p166
        %p290 = pneg %p190
        %p291 = pneg %p187
        %p292 = pneg %p216
        %p293 = pneg %p213
        %s294 = sand.u32 %s203, 1
        %s295 = scalar_lea.sflag [#allocation3], %s294
        %s296 = sand.u32 %s203, 1
        %s297 = smul.addr %s296, 8
        %s298 = scalar_lea.vmem [#allocation2], %s297
        %p299 = scmp.lt.s32.totalorder %s22, 1
        %s300 = scalar_select %p299, %s22, 1
        %s301 = smul.addr %s300, 3
        %s302 = smul.addr %s301, 8
        %s303 = scalar_lea.vmem %s0, %s302
        %v305 = vld [vmem:[%s303] sm:$0xff]
        %v306 = vld [vmem:[%s303 + $0x8] sm:$0xff]
        %v307 = vld [vmem:[%s303 + $0x10] sm:$0xff]
        %v308 = vld [vmem:[%s2] sm:$0x7]
        %v309 = vld [vmem:[%s3] sm:$0x7]
        %v310 = vadd.f32 %v305, %v306
        %v311 = vadd.f32 %v310, %v307
        %312 = vadd.xlane.f32.xlu0 %v311
        %v313 = vpop.xlane.xlu0 %312
        %v314 = vrcp.pop 384.0
        %v315 = vmul.f32 %v313, %v314
        %v316 = vsub.f32 %v305, %v315
        %v317 = vsub.f32 %v306, %v315
        %v318 = vsub.f32 %v307, %v315
        %v319 = vmul.f32 %v316, %v316
        %v320 = vmul.f32 %v317, %v317
        %v321 = vmul.f32 %v318, %v318
        %v322 = vadd.f32 %v319, %v320
        %v323 = vadd.f32 %v322, %v321
        %324 = vadd.xlane.f32.xlu0 %v323
        %v325 = vpop.xlane.xlu0 %324
        %v326 = vmul.f32 %v325, %v314
        %v327 = vadd.f32 %v326, 1e-05
        %v328 = vrsqrt.pop %v327
        %v329 = vmul.f32 %v316, %v328
        %v330 = vmul.f32 %v317, %v328
        %v331 = vmul.f32 %v318, %v328
        %v333 = vlaneseq
        %v334 = vshrl.u32 %v333, 7
        %v335 = vsub.s32 0, %v334
        %v336 = vrot.slane %v308, %v335
        %v337 = vlaneseq
        %v338 = vshrl.u32 %v337, 7
        %v339 = vsub.s32 1, %v338
        %v340 = vrot.slane %v308, %v339
        %v341 = vlaneseq
        %v342 = vshrl.u32 %v341, 7
        %v343 = vsub.s32 2, %v342
        %v344 = vrot.slane %v308, %v343
        %v348 = vmul.f32 %v329, %v336
        %v349 = vmul.f32 %v330, %v340
        %v350 = vmul.f32 %v331, %v344
        %v352 = vlaneseq
        %v353 = vshrl.u32 %v352, 7
        %v354 = vsub.s32 0, %v353
        %v355 = vrot.slane %v309, %v354
        %v356 = vlaneseq
        %v357 = vshrl.u32 %v356, 7
        %v358 = vsub.s32 1, %v357
        %v359 = vrot.slane %v309, %v358
        %v360 = vlaneseq
        %v361 = vshrl.u32 %v360, 7
        %v362 = vsub.s32 2, %v361
        %v363 = vrot.slane %v309, %v362
        %v367 = vadd.f32 %v348, %v355
        %v368 = vadd.f32 %v349, %v359
        %v369 = vadd.f32 %v350, %v363
        %v370 = vpack.c.bf16 %v367, %v367
        %v371 = vpack.c.bf16 %v368, %v368
        %v372 = vpack.c.bf16 %v369, %v369
        %v373 = vld [vmem:[%s4] sm:$0xf]
        %v374 = vld [vmem:[%s4 + $0x4] sm:$0xf]
        %v375 = vld [vmem:[%s4 + $0x8] sm:$0xf]
        %v376 = vld [vmem:[%s4 + $0xc] sm:$0xf]
        %v377 = vld [vmem:[%s4 + $0x10] sm:$0xf]
        %v378 = vld [vmem:[%s4 + $0x14] sm:$0xf]
        %v379 = vld [vmem:[%s4 + $0x18] sm:$0xf]
        %v380 = vld [vmem:[%s4 + $0x1c] sm:$0xf]
        %v381 = vld [vmem:[%s4 + $0x20] sm:$0xf]
        %v382 = vld [vmem:[%s4 + $0x24] sm:$0xf]
        %v383 = vld [vmem:[%s4 + $0x28] sm:$0xf]
        %v384 = vld [vmem:[%s4 + $0x2c] sm:$0xf]
        %v385 = vld [vmem:[%s4 + $0x30] sm:$0xf]
        %v386 = vld [vmem:[%s4 + $0x34] sm:$0xf]
        %v387 = vld [vmem:[%s4 + $0x38] sm:$0xf]
        %v388 = vld [vmem:[%s4 + $0x3c] sm:$0xf]
        %v389 = vld [vmem:[%s4 + $0x40] sm:$0xf]
        %v390 = vld [vmem:[%s4 + $0x44] sm:$0xf]
        %v391 = vld [vmem:[%s4 + $0x48] sm:$0xf]
        %v392 = vld [vmem:[%s4 + $0x4c] sm:$0xf]
        %v393 = vld [vmem:[%s4 + $0x50] sm:$0xf]
        %v394 = vld [vmem:[%s4 + $0x54] sm:$0xf]
        %v395 = vld [vmem:[%s4 + $0x58] sm:$0xf]
        %v396 = vld [vmem:[%s4 + $0x5c] sm:$0xf]
        %v397 = vld [vmem:[%s4 + $0x60] sm:$0xf]
        %v398 = vld [vmem:[%s4 + $0x64] sm:$0xf]
        %v399 = vld [vmem:[%s4 + $0x68] sm:$0xf]
        %v400 = vld [vmem:[%s4 + $0x6c] sm:$0xf]
        %v401 = vld [vmem:[%s4 + $0x70] sm:$0xf]
        %v402 = vld [vmem:[%s4 + $0x74] sm:$0xf]
        %v403 = vld [vmem:[%s4 + $0x78] sm:$0xf]
        %v404 = vld [vmem:[%s4 + $0x7c] sm:$0xf]
        %v405 = vld [vmem:[%s4 + $0x80] sm:$0xf]
        %v406 = vld [vmem:[%s4 + $0x84] sm:$0xf]
        %v407 = vld [vmem:[%s4 + $0x88] sm:$0xf]
        %v408 = vld [vmem:[%s4 + $0x8c] sm:$0xf]
        %v409 = vld [vmem:[%s4 + $0x90] sm:$0xf]
        %v410 = vld [vmem:[%s4 + $0x94] sm:$0xf]
        %v411 = vld [vmem:[%s4 + $0x98] sm:$0xf]
        %v412 = vld [vmem:[%s4 + $0x9c] sm:$0xf]
        %v413 = vld [vmem:[%s4 + $0xa0] sm:$0xf]
        %v414 = vld [vmem:[%s4 + $0xa4] sm:$0xf]
        %v415 = vld [vmem:[%s4 + $0xa8] sm:$0xf]
        %v416 = vld [vmem:[%s4 + $0xac] sm:$0xf]
        %v417 = vld [vmem:[%s4 + $0xb0] sm:$0xf]
        %v418 = vld [vmem:[%s4 + $0xb4] sm:$0xf]
        %v419 = vld [vmem:[%s4 + $0xb8] sm:$0xf]
        %v420 = vld [vmem:[%s4 + $0xbc] sm:$0xf]
        %v421 = vld [vmem:[%s5] sm:$0x1]
        %v423 = vlaneseq
        %v424 = vshrl.u32 %v423, 7
        %v425 = vsub.s32 0, %v424
        %v426 = vrot.slane %v421, %v425
        %v476 = vunpack.c.l.b16 %v373
        %v477 = vunpack.c.l.b16 %v374
        %v478 = vunpack.c.l.b16 %v375
        %v479 = vunpack.c.l.b16 %v376
        %v480 = vunpack.c.l.b16 %v377
        %v481 = vunpack.c.l.b16 %v378
        %v482 = vunpack.c.l.b16 %v379
        %v483 = vunpack.c.l.b16 %v380
        %v484 = vunpack.c.l.b16 %v381
        %v485 = vunpack.c.l.b16 %v382
        %v486 = vunpack.c.l.b16 %v383
        %v487 = vunpack.c.l.b16 %v384
        %v488 = vunpack.c.l.b16 %v385
        %v489 = vunpack.c.l.b16 %v386
        %v490 = vunpack.c.l.b16 %v387
        %v491 = vunpack.c.l.b16 %v388
        %v492 = vunpack.c.l.b16 %v389
        %v493 = vunpack.c.l.b16 %v390
        %v494 = vunpack.c.l.b16 %v391
        %v495 = vunpack.c.l.b16 %v392
        %v496 = vunpack.c.l.b16 %v393
        %v497 = vunpack.c.l.b16 %v394
        %v498 = vunpack.c.l.b16 %v395
        %v499 = vunpack.c.l.b16 %v396
        %v500 = vunpack.c.l.b16 %v397
        %v501 = vunpack.c.l.b16 %v398
        %v502 = vunpack.c.l.b16 %v399
        %v503 = vunpack.c.l.b16 %v400
        %v504 = vunpack.c.l.b16 %v401
        %v505 = vunpack.c.l.b16 %v402
        %v506 = vunpack.c.l.b16 %v403
        %v507 = vunpack.c.l.b16 %v404
        %v508 = vunpack.c.l.b16 %v405
        %v509 = vunpack.c.l.b16 %v406
        %v510 = vunpack.c.l.b16 %v407
        %v511 = vunpack.c.l.b16 %v408
        %v512 = vunpack.c.l.b16 %v409
        %v513 = vunpack.c.l.b16 %v410
        %v514 = vunpack.c.l.b16 %v411
        %v515 = vunpack.c.l.b16 %v412
        %v516 = vunpack.c.l.b16 %v413
        %v517 = vunpack.c.l.b16 %v414
        %v518 = vunpack.c.l.b16 %v415
        %v519 = vunpack.c.l.b16 %v416
        %v520 = vunpack.c.l.b16 %v417
        %v521 = vunpack.c.l.b16 %v418
        %v522 = vunpack.c.l.b16 %v419
        %v523 = vunpack.c.l.b16 %v420
        %v524 = vpack.c.b16 %v477, %v476
        %v525 = vpack.c.b16 %v479, %v478
        %v526 = vpack.c.b16 %v481, %v480
        %v527 = vpack.c.b16 %v483, %v482
        %v528 = vpack.c.b16 %v485, %v484
        %v529 = vpack.c.b16 %v487, %v486
        %v530 = vpack.c.b16 %v489, %v488
        %v531 = vpack.c.b16 %v491, %v490
        %v532 = vpack.c.b16 %v493, %v492
        %v533 = vpack.c.b16 %v495, %v494
        %v534 = vpack.c.b16 %v497, %v496
        %v535 = vpack.c.b16 %v499, %v498
        %v536 = vpack.c.b16 %v501, %v500
        %v537 = vpack.c.b16 %v503, %v502
        %v538 = vpack.c.b16 %v505, %v504
        %v539 = vpack.c.b16 %v507, %v506
        %v540 = vpack.c.b16 %v509, %v508
        %v541 = vpack.c.b16 %v511, %v510
        %v542 = vpack.c.b16 %v513, %v512
        %v543 = vpack.c.b16 %v515, %v514
        %v544 = vpack.c.b16 %v517, %v516
        %v545 = vpack.c.b16 %v519, %v518
        %v546 = vpack.c.b16 %v521, %v520
        %v547 = vpack.c.b16 %v523, %v522
        %572 = vmatprep.subr.bf16.mxu0 0
        %573 = vmatpush1.bf16.msra.mxu0 %v524
        %574 = vmatprep.subr.bf16.mxu0 0
        %575 = vmatpush1.bf16.msra.mxu0 %v525
        %576 = vmatprep.subr.bf16.mxu0 0
        %577 = vmatpush1.bf16.msra.mxu0 %v526
        %578 = vmatprep.subr.bf16.mxu0 0
        %579 = vmatpush1.bf16.msra.mxu0 %v527
        %580 = vmatprep.subr.bf16.mxu0 0
        %581 = vmatpush1.bf16.msra.mxu0 %v528
        %582 = vmatprep.subr.bf16.mxu0 0
        %583 = vmatpush1.bf16.msra.mxu0 %v529
        %584 = vmatprep.subr.bf16.mxu0 0
        %585 = vmatpush1.bf16.msra.mxu0 %v530
        %586 = vmatprep.subr.bf16.mxu0 0
        %587 = vmatpush1.bf16.msra.mxu0 %v531
        %588 = vmatprep.subr.bf16.mxu0 0
        %589 = vmatpush1.bf16.msra.mxu0 %v532
        %590 = vmatprep.subr.bf16.mxu0 0
        %591 = vmatpush1.bf16.msra.mxu0 %v533
        %592 = vmatprep.subr.bf16.mxu0 0
        %593 = vmatpush1.bf16.msra.mxu0 %v534
        %594 = vmatprep.subr.bf16.mxu0 0
        %595 = vmatpush1.bf16.msra.mxu0 %v535
        %596 = vmatprep.subr.bf16.mxu0 0
        %597 = vmatpush1.bf16.msra.mxu0 %v536
        %598 = vmatprep.subr.bf16.mxu0 0
        %599 = vmatpush1.bf16.msra.mxu0 %v537
        %600 = vmatprep.subr.bf16.mxu0 0
        %601 = vmatpush1.bf16.msra.mxu0 %v538
        %602 = vmatprep.subr.bf16.mxu0 0
        %603 = vmatpush1.bf16.msra.mxu0 %v539
        %604 = vmatprep.mubr.bf16.mxu0 %v371
        %605 = vmatmul.mubr.bf16.gmra.mrb[0].mxu0 %v370
        %v606 = vpop.f32.mrb[0].mxu0
        %v607 = vadd.f32 %v426, %v606
        %v608 = vpop.f32.mrb[0].mxu0
        %v609 = vpop.f32.mrb[0].mxu0
        %v610 = vpop.f32.mrb[0].mxu0
        %611 = vdwg.mxu0
        %612 = vmatprep.subr.bf16.mxu0 0
        %613 = vmatpush1.bf16.msra.mxu0 %v540
        %614 = vmatprep.subr.bf16.mxu0 0
        %615 = vmatpush1.bf16.msra.mxu0 %v541
        %616 = vmatprep.subr.bf16.mxu0 0
        %617 = vmatpush1.bf16.msra.mxu0 %v542
        %618 = vmatprep.subr.bf16.mxu0 0
        %619 = vmatpush1.bf16.msra.mxu0 %v543
        %620 = vmatprep.subr.bf16.mxu0 0
        %621 = vmatpush1.bf16.msra.mxu0 %v544
        %622 = vmatprep.subr.bf16.mxu0 0
        %623 = vmatpush1.bf16.msra.mxu0 %v545
        %624 = vmatprep.subr.bf16.mxu0 0
        %625 = vmatpush1.bf16.msra.mxu0 %v546
        %626 = vmatprep.subr.bf16.mxu0 0
        %627 = vmatpush1.bf16.msra.mxu0 %v547
        %628 = vmatprep.subr.bf16.mxu0 0
        %629 = vmatpush1.bf16.msra.mxu0 0
        %630 = vmatprep.subr.bf16.mxu0 0
        %631 = vmatpush1.bf16.msra.mxu0 0
        %632 = vmatprep.subr.bf16.mxu0 0
        %633 = vmatpush1.bf16.msra.mxu0 0
        %634 = vmatprep.subr.bf16.mxu0 0
        %635 = vmatpush1.bf16.msra.mxu0 0
        %636 = vmatprep.subr.bf16.mxu0 0
        %637 = vmatpush1.bf16.msra.mxu0 0
        %638 = vmatprep.subr.bf16.mxu0 0
        %639 = vmatpush1.bf16.msra.mxu0 0
        %640 = vmatprep.subr.bf16.mxu0 0
        %641 = vmatpush1.bf16.msra.mxu0 0
        %642 = vmatprep.subr.bf16.mxu0 0
        %643 = vmatpush1.bf16.msra.mxu0 0
        %644 = vmatprep.mubr.bf16.mxu0 0
        %645 = vmatmul.mubr.bf16.gmra.mrb[0].mxu0 %v372
        %v646 = vpop.f32.mrb[0].mxu0
        %v647 = vadd.f32 %v607, %v646
        %v648 = vpop.f32.mrb[0].mxu0
        %v649 = vpop.f32.mrb[0].mxu0
        %v650 = vpop.f32.mrb[0].mxu0
        %651 = vdwg.mxu0
        %v652 = vld [vmem:[%s6] sm:$0x1]
        %v653 = vld [vmem:[%s7] sm:$0x1]
        %vm654 = vcmask 261120
        %v655 = vsel %vm654, %v647, 0.0
        %656 = vadd.xlane.f32.xlu0 %v655
        %v657 = vpop.xlane.xlu0 %656
        %v658 = vrcp.pop 32.0
        %v659 = vmul.f32 %v657, %v658
        %v660 = vsub.f32 %v647, %v659
        %v661 = vmul.f32 %v660, %v660
        %v662 = vsel %vm654, %v661, 0.0
        %663 = vadd.xlane.f32.xlu0 %v662
        %v664 = vpop.xlane.xlu0 %663
        %v665 = vmul.f32 %v664, %v658
        %v666 = vadd.f32 %v665, 1e-05
        %v667 = vrsqrt.pop %v666
        %v668 = vmul.f32 %v660, %v667
        %v670 = vlaneseq
        %v671 = vshrl.u32 %v670, 7
        %v672 = vsub.s32 0, %v671
        %v673 = vrot.slane %v652, %v672
        %v675 = vmul.f32 %v668, %v673
        %v677 = vlaneseq
        %v678 = vshrl.u32 %v677, 7
        %v679 = vsub.s32 0, %v678
        %v680 = vrot.slane %v653, %v679
        %v682 = vadd.f32 %v675, %v680
        %v683 = vld [vmem:[%s1] sm:$0xff]
        %v684 = vadd.f32 %v682, %v683
        %685 = vst.msk [vmem:[%s298] sm:$0xff] %vm654, %v684
        %s686 = sand.u32 %s203, 1
        %s687 = scalar_lea.sflag [#allocation3], %s686
        %s688 = sand.u32 %s203, 1
        %s689 = smul.addr %s688, 8
        %s690 = scalar_lea.vmem [#allocation2], %s689
        // Predicated region
        $region53: #{tpu_custom_call.1} parent=51 // pred_check
          %p691 = pneg %p213
        $region54: #{tpu_custom_call.1} parent=51 // pred_check_branch
          %693 = sbr.rel (%p691) target = $region56
        $region55: #{tpu_custom_call.1} parent=51 // pred_region
          %s695 = ssub.s32 128, 128
          %696 = vsyncadd %s687, %s695
          %s697 = smul.addr %s22, 128
          %s698 = scalar_lea.hbm %s8, %s697
          %s700 = sshll.u32 %s690, 4
          %s701 = int_to_ptr.vmem [resolvable:$true] %s700
          %703 = dma.vmem_to_hbm [thread:$0]  %s701, 128, %s698, %s687
        $region56: #{tpu_custom_call.1} parent=51 // pred_fallthru
          _
      $region52: #{tpu_custom_call.1} parent=5 // pred_fallthru
        _
      %p704 = scmp.le.s32.totalorder 2, %s17
      // Predicated region
      $region57: #{tpu_custom_call.1} parent=5 // pred_check
        %p705 = pneg %p704
      $region58: #{tpu_custom_call.1} parent=5 // pred_check_branch
        %707 = sbr.rel (%p705) target = $region60
      $region59: #{tpu_custom_call.1} parent=5 // pred_region
        %s708 = ssub.s32 %s17, 2
        // Predicated region
        $region61: #{tpu_custom_call.1} parent=59 // pred_check
          %p709 = pneg %p219
        $region62: #{tpu_custom_call.1} parent=59 // pred_check_branch
          %711 = sbr.rel (%p709) target = $region64
        $region63: #{tpu_custom_call.1} parent=59 // pred_region
          %s712 = sand.u32 %s204, 1
          %s713 = scalar_lea.sflag [#allocation3], %s712
          %s714 = sand.u32 %s204, 1
          %s715 = smul.addr %s714, 8
          %s716 = scalar_lea.vmem [#allocation2], %s715
          %717 = dma.done %s713, 128
        $region64: #{tpu_custom_call.1} parent=59 // pred_fallthru
          _
      $region60: #{tpu_custom_call.1} parent=5 // pred_fallthru
        _
    $region6: #{tpu_custom_call.1} parent=1 // loop_footer
      %s21 = sadd.s32 1, %s17
    $region7: #{tpu_custom_call.1} parent=1 // loop_footer_branch
      %16 = sbr.rel target = $region3
    $region8: #{tpu_custom_call.1} parent=1 // loop_exit
      _
    %718 = vsyncpa [#allocation3], 1
    %s719 = scalar_lea.sflag [#allocation3], 1
    %720 = vsyncpa %s719, 1

</llo_original>
